<compile_context>
chip_gen: v7x
topology: tpu7x:2x2x1
jax: 0.10.0
libtpu: 0.0.40
codegen_flags: <defaults>
</compile_context>

<pallas_src>
import jax
import jax.numpy as jnp
from jax.experimental import pallas as pl
from jax.experimental.pallas import tpu as pltpu


# ---------------------------------------------------------------------------
# Kernels
# ---------------------------------------------------------------------------

def _copy_tile_kernel(x_ref, o_ref):
    # Pure copy of one VMEM tile: the entire forward pass of nn.Identity.
    o_ref[...] = x_ref[...]


def _copy_dma_kernel(x_hbm_ref, o_hbm_ref):
    # Direct HBM -> HBM DMA: no VMEM round-trip, no per-step overhead.
    def body(sem):
        cp = pltpu.make_async_copy(x_hbm_ref, o_hbm_ref, sem)
        cp.start()
        cp.wait()
    pl.run_scoped(body, pltpu.SemaphoreType.DMA)


# dtype itemsize (bytes) -> sublane multiple for the second-to-last block dim.
_SUBLANE_BY_ITEMSIZE = {4: 8, 2: 16, 1: 32}


def _target_tile_bytes():
    """Per-generation tile-buffer budget for the tiled copy path."""
    try:
        kind = jax.devices()[0].device_kind.lower()
    except Exception:  # pragma: no cover - defensive
        kind = ""
    if "v5" in kind:
        # v5e scoped-VMEM default is 16 MiB: 2 MiB tiles -> ~8 MiB peak
        # (double-buffered in + out) stays comfortably inside it.
        return 2 * 1024 * 1024
    # v6e / v7x: 32 MiB scoped default; 4 MiB tiles -> ~16 MiB peak, and
    # fewer grid steps on the fast-HBM chips (per-step overhead ~0.35 us).
    return 4 * 1024 * 1024


# ---------------------------------------------------------------------------
# Materializing copy paths
# ---------------------------------------------------------------------------

def _materialize_dma(x):
    n_bytes = 2 * x.size * jnp.dtype(x.dtype).itemsize
    return pl.pallas_call(
        _copy_dma_kernel,
        out_shape=jax.ShapeDtypeStruct(x.shape, x.dtype),
        in_specs=[pl.BlockSpec(memory_space=pl.ANY)],
        out_specs=pl.BlockSpec(memory_space=pl.ANY),
        cost_estimate=pl.CostEstimate(
            flops=0, transcendentals=0, bytes_accessed=n_bytes),
    )(x)


def _materialize_tiled(x):
    orig_shape = x.shape
    dtype = x.dtype
    n = x.size
    itemsize = jnp.dtype(dtype).itemsize
    tile_bytes = _target_tile_bytes()
    cost = pl.CostEstimate(
        flops=0, transcendentals=0, bytes_accessed=2 * n * itemsize)

    flat = x.reshape(-1)  # metadata-only reshape of a contiguous array

    # Widest lane-dense column count (multiple of 128) that divides n exactly
    # -> unmasked full-width vst, no padding, no extra HBM passes.
    cols = None
    for c in (1024, 512, 256, 128):
        if n % c == 0:
            cols = c
            break

    if cols is None:
        # n not a multiple of 128: tile the flattened axis in multiple-of-128
        # chunks (partial last block is masked) so VMEM stays bounded and the
        # copy stays pipelined even for large awkwardly-sized tensors.
        x2d = flat.reshape(1, n)
        if n < 1024:
            tile_cols = n  # tiny: one full-extent block
        else:
            max_cols = max(128, (tile_bytes // itemsize) // 128 * 128)
            tile_cols = min(max_cols, (n // 128) * 128)
        grid = (pl.cdiv(n, tile_cols),)
        out2d = pl.pallas_call(
            _copy_tile_kernel,
            out_shape=jax.ShapeDtypeStruct((1, n), dtype),
            grid=grid,
            in_specs=[pl.BlockSpec((1, tile_cols), lambda i: (0, i))],
            out_specs=pl.BlockSpec((1, tile_cols), lambda i: (0, i)),
            compiler_params=pltpu.CompilerParams(
                dimension_semantics=("parallel",)),
            cost_estimate=cost,
        )(x2d)
        return out2d.reshape(orig_shape)

    rows = n // cols
    sublane = _SUBLANE_BY_ITEMSIZE.get(itemsize, 8)

    if rows <= sublane:
        tile_rows = rows  # single full-extent block (no (8,128) requirement)
    else:
        # Largest sublane-multiple tile within the per-generation byte budget
        max_tile = max(sublane,
                       (tile_bytes // (cols * itemsize)) // sublane * sublane)
        # ... forced to give >= 2 grid steps so both v7x TensorCores (and
        # their DMA engines) share the copy ...
        half = -(-rows // 2)                       # cdiv(rows, 2)
        half = -(-half // sublane) * sublane       # round up to sublane
        max_tile = min(max_tile, half)
        # ... preferring an even divisor of rows to avoid a masked partial
        # final block (vst.msk + short overhead-dominated trailing DMA).
        tile_rows = max_tile
        for t in range(max_tile, sublane - 1, -sublane):
            if rows % t == 0:
                tile_rows = t
                break

    x2d = flat.reshape(rows, cols)
    grid = (pl.cdiv(rows, tile_rows),)

    out2d = pl.pallas_call(
        _copy_tile_kernel,
        out_shape=jax.ShapeDtypeStruct((rows, cols), dtype),
        grid=grid,
        in_specs=[pl.BlockSpec((tile_rows, cols), lambda i: (i, 0))],
        out_specs=pl.BlockSpec((tile_rows, cols), lambda i: (i, 0)),
        compiler_params=pltpu.CompilerParams(
            dimension_semantics=("parallel",)),
        cost_estimate=cost,
    )(x2d)
    return out2d.reshape(orig_shape)


# ---------------------------------------------------------------------------
# Public forward pass
# ---------------------------------------------------------------------------

def identity_forward(x, *, materialize=False, method="dma"):
    """Forward pass of nn.Identity.

    Default (materialize=False): returns `x` unchanged -- zero HBM traffic,
    which is the optimal implementation of an identity layer.

    materialize=True: returns a freshly-materialized buffer equal to `x`
    using a Pallas kernel. method="dma" issues one direct HBM->HBM DMA;
    method="tiled" uses a BlockSpec-pipelined VMEM copy.
    """
    if not materialize:
        return x
    if x.size == 0:
        return x
    if method == "dma":
        return _materialize_dma(x)
    if method == "tiled":
        return _materialize_tiled(x)
    raise ValueError(f"unknown method: {method!r}")


if __name__ == "__main__":
    key = jax.random.PRNGKey(0)

    # Primary input implied by the module's usage: NCHW feature map.
    x = jax.random.normal(key, (2, 4, 16, 16), dtype=jnp.float32)

    # 1) True identity (the actual forward pass): return x, no kernel at all.
    y = jax.block_until_ready(identity_forward(x))
    assert y.shape == x.shape and y.dtype == x.dtype
    assert bool(jnp.all(y == x)), "identity (passthrough) mismatch"

    # 2) Materialized copy via direct HBM->HBM DMA.
    y_dma = jax.block_until_ready(
        identity_forward(x, materialize=True, method="dma"))
    assert y_dma.shape == x.shape and y_dma.dtype == x.dtype
    assert bool(jnp.all(y_dma == x)), "identity (dma copy) mismatch"

    # 3) Materialized copy via the tiled VMEM pipeline (>= 2 grid steps).
    x3 = jax.random.normal(key, (4, 8, 32, 32), dtype=jnp.float32)
    y_tiled = jax.block_until_ready(
        identity_forward(x3, materialize=True, method="tiled"))
    assert y_tiled.shape == x3.shape and y_tiled.dtype == x3.dtype
    assert bool(jnp.all(y_tiled == x3)), "identity (tiled copy) mismatch"

    # 4) Awkward size (n % 128 != 0) + bf16: fallback lane tiling and DMA.
    x2 = jax.random.normal(key, (2, 3, 7, 5), dtype=jnp.bfloat16)
    y2a = jax.block_until_ready(
        identity_forward(x2, materialize=True, method="tiled"))
    y2b = jax.block_until_ready(
        identity_forward(x2, materialize=True, method="dma"))
    assert y2a.shape == x2.shape and y2a.dtype == x2.dtype
    assert bool(jnp.all(y2a == x2)), "identity (tiled bf16 fallback) mismatch"
    assert bool(jnp.all(y2b == x2)), "identity (dma bf16) mismatch"

    print("KERNEL_OK")
</pallas_src>

<mosaic_0001>
module attributes {stable_mosaic.version = 11 : i64} {
  func.func @_copy_dma_kernel(%arg0: memref<2x4x16x16xf32, #tpu.memory_space<any>>, %arg1: memref<2x4x16x16xf32, #tpu.memory_space<any>>) attributes {dimension_semantics = [], scalar_prefetch = 0 : i64, scratch_operands = 0 : i64, tpu.core_type = #tpu.core_type<tc>} {
    "tpu.region"() ({
      %0 = tpu.sem_alloc : memref<!tpu.dma_semaphore, #tpu.memory_space<semaphore_mem>>
      tpu.enqueue_dma source(%arg0 : memref<2x4x16x16xf32, #tpu.memory_space<any>>) target(%arg1 : memref<2x4x16x16xf32, #tpu.memory_space<any>>) target_semaphore(%0 : memref<!tpu.dma_semaphore, #tpu.memory_space<semaphore_mem>>)
      tpu.wait_dma2 semaphore(%0 : memref<!tpu.dma_semaphore, #tpu.memory_space<semaphore_mem>>) src(%arg0 : memref<2x4x16x16xf32, #tpu.memory_space<any>>) dst(%arg1 : memref<2x4x16x16xf32, #tpu.memory_space<any>>)
      tpu.yield
    }) : () -> ()
    return
  }
}

</mosaic_0001>

<llo_original>
// kernel: tpu_custom_call.1
$region0: #{tpu_custom_call.1}
  #allocation0 [shape = 'u32[]', space=smem, size = 0x4, offset = 0x4, fixed_abs, tag = 'smem constant byte address 0x4 - core index']
  #allocation1 [shape = 'u32[144,128]{1,0:T(1,128)}', space=vmem, size = 0x12000, scoped, tag = 'internal scratch']
  #allocation3 [shape = 's32[]', space=sflag, size = 0x4, offset = 0, fixed_abs, tag = 'sflag constant byte address 0x0 - dummy sync flag']
  #allocation4 [shape = 'u32[0]{0}', space=smem, size = 0, offset = 0, fixed_abs, tag = 'smem constant byte address 0x0 - null']
  %s0 = inlined_call_operand.hbm [shape: f32[2,4,16,16], index: 0, kind: input, shape index: {}]
  %s1 = inlined_call_operand.hbm [shape: f32[2,4,16,16], index: 1, kind: output, shape index: {}]
  %s2 = sld [smem:[#allocation0]]
  $region3: #{tpu_custom_call.1} parent=0
    _
  %s4 = ssub.s32 1, %s2
  %s5 = scalar_select 0, %s4, %s2
  $region2: #{tpu_custom_call.1} parent=0
    #allocation2 [shape = 's32[1]{0}', space=sflag, size = 0x4, scoped, tag = 'scoped memory for tpu_custom_call.1']
    %s7 = sshll.u32 1, 14
    %s8 = sxor.u32 4294967295, %s7
    %s11 = sshll.u32 3, 24
    %s12 = sxor.u32 4294967295, %s11
    %s13 = sand.u32 0, %s12
    %s15 = sor.u32 %s13, 0
    %18 = dma.general %s0, 2048, %s1, [#allocation2], [#allocation3], [#allocation4], %s15, 0
    %s19 = smul.u32 2, 4
    %s20 = smul.u32 %s19, 16
    %s21 = smul.u32 %s20, 1
    %s22 = sshll.u32 %s21, 4
    %23 = dma.done [#allocation2], %s22

</llo_original>
